<compile_context>
chip_gen: v6e
topology: v6e:2x2x1
jax: 0.10.0
libtpu: 0.0.40
codegen_flags: <defaults>
</compile_context>

<pallas_src>
import functools

import jax
import jax.numpy as jnp
from jax.experimental import pallas as pl
from jax.experimental.pallas import tpu as pltpu

_LANE = 128


def _conv1x1_kernel(w_ref, b_ref, x_ref, o_ref, *, compute_dtype):
    # w_ref: (C_out, C_in)          resident across the grid
    # b_ref: (C_out, 1)   f32       resident across the grid
    # x_ref: (1, C_in, TILE_HW)     native-dtype NCHW slab (lane-dense on HW)
    # o_ref: (1, C_out, TILE_HW)    lane-dense on HW
    x = x_ref[0]
    w = w_ref[...]
    if compute_dtype is not None:
        # In-kernel cast (VPU, free under the HBM roofline) instead of a
        # separate wrapper-side convert pass over the activations.
        x = x.astype(compute_dtype)
        w = w.astype(compute_dtype)
    acc = jnp.dot(w, x, preferred_element_type=jnp.float32)
    o_ref[0] = (acc + b_ref[...]).astype(o_ref.dtype)


def _choose_tile_hw(HW, B, C_in, C_out, x_bytes, out_bytes,
                    max_tile=32768, min_grid_steps=4,
                    vmem_budget_bytes=24 << 20):
    """Pick a lane-dense pixel tile.

    Largest multiple of 128 that (a) fits the double-buffered VMEM budget,
    (b) does not exceed max_tile, and (c) still leaves enough grid steps for
    megacore sharding on v7x.
    """
    if HW <= _LANE:
        return HW  # single full-extent block
    per_pixel = 2 * (C_in * x_bytes + C_out * out_bytes)  # double-buffered
    vmem_cap = max(_LANE, (vmem_budget_bytes // per_pixel) // _LANE * _LANE)
    tile = min(max_tile, vmem_cap, HW)
    tile = max(_LANE, (tile // _LANE) * _LANE)
    # Keep both v7x TensorCores fed: at least ~min_grid_steps grid steps.
    while tile > _LANE and B * pl.cdiv(HW, tile) < min_grid_steps:
        tile = max(_LANE, ((tile // 2) // _LANE) * _LANE)
    return tile


def conv1x1_nchw_pallas(x_bchw_flat, weight, bias, *, out_dtype=None,
                        compute_dtype=jnp.bfloat16, max_tile_hw=32768):
    """1x1 conv over channels, NCHW layout, Y^T = W @ X^T formulation.

    x_bchw_flat : (B, C_in, HW)  activations (native dtype, no pre-cast)
    weight      : (C_out, C_in)
    bias        : (C_out,)
    out_dtype   : output dtype (default: same as x)
    compute_dtype: dtype for the MXU operands (None -> full input precision)
    returns     : (B, C_out, HW)
    """
    B, C_in, HW = x_bchw_flat.shape
    C_out = weight.shape[0]
    if out_dtype is None:
        out_dtype = x_bchw_flat.dtype

    tile = _choose_tile_hw(
        HW, B, C_in, C_out,
        x_bytes=x_bchw_flat.dtype.itemsize,
        out_bytes=jnp.dtype(out_dtype).itemsize,
        max_tile=max_tile_hw)
    grid = (B, pl.cdiv(HW, tile))  # ragged last block is masked by Pallas

    bias2d = bias.astype(jnp.float32).reshape(C_out, 1)

    flops = int(2 * B * HW * C_in * C_out)
    bytes_accessed = int(
        x_bchw_flat.size * x_bchw_flat.dtype.itemsize
        + weight.size * weight.dtype.itemsize
        + bias2d.size * bias2d.dtype.itemsize
        + B * C_out * HW * jnp.dtype(out_dtype).itemsize)
    cost = pl.CostEstimate(
        flops=flops, transcendentals=0, bytes_accessed=bytes_accessed)

    kernel = functools.partial(_conv1x1_kernel, compute_dtype=compute_dtype)

    return pl.pallas_call(
        kernel,
        out_shape=jax.ShapeDtypeStruct((B, C_out, HW), out_dtype),
        grid=grid,
        in_specs=[
            pl.BlockSpec((C_out, C_in), lambda b, t: (0, 0)),   # weight: resident
            pl.BlockSpec((C_out, 1), lambda b, t: (0, 0)),      # bias: resident
            pl.BlockSpec((1, C_in, tile), lambda b, t: (b, 0, t)),
        ],
        out_specs=pl.BlockSpec((1, C_out, tile), lambda b, t: (b, 0, t)),
        compiler_params=pltpu.CompilerParams(
            dimension_semantics=("parallel", "parallel")),
        cost_estimate=cost,
    )(weight, bias2d, x_bchw_flat)


def patch_unembed(x_nchw, weight, bias, patch_size, out_chans, *,
                  compute_dtype=jnp.bfloat16, out_dtype=None):
    """Forward pass of PatchUnEmbed (kernel_size=1 path).

    x_nchw : (B, embed_dim, H, W)
    weight : (C_out, embed_dim) with C_out = out_chans * patch_size**2
    bias   : (C_out,)
    returns: (B, out_chans, H*patch_size, W*patch_size)   (NCHW, like PyTorch)
    """
    B, C_in, H, W = x_nchw.shape
    C_out = weight.shape[0]
    r = patch_size

    # Free reshape: NCHW -> (B, C_in, H*W).  No transpose, no dtype pass.
    x_flat = x_nchw.reshape(B, C_in, H * W)

    # 1x1 conv as W @ X^T  [Pallas hot path]; result is (B, C_out, H*W).
    y = conv1x1_nchw_pallas(x_flat, weight, bias,
                            compute_dtype=compute_dtype, out_dtype=out_dtype)
    y = y.reshape(B, C_out, H, W)

    # PixelShuffle(r): out[b, c, h*r+i, w*r+j] = y[b, c*r*r + i*r + j, h, w]
    y = y.reshape(B, out_chans, r, r, H, W)
    y = jnp.transpose(y, (0, 1, 4, 2, 5, 3))          # (B, out_chans, H, r, W, r)
    y = y.reshape(B, out_chans, H * r, W * r)
    return y


if __name__ == "__main__":
    # Small but consistent configuration (module defaults scaled down).
    patch_size = 2
    out_chans = 3
    embed_dim = 32
    B, H, W = 2, 16, 16
    C_out = out_chans * patch_size ** 2  # 12

    key = jax.random.PRNGKey(0)
    kx, kw, kb = jax.random.split(key, 3)

    x = jax.random.normal(kx, (B, embed_dim, H, W), dtype=jnp.float32)
    # Conv2d 1x1 weight has shape (C_out, C_in, 1, 1); stored squeezed.
    weight = jax.random.normal(kw, (C_out, embed_dim), dtype=jnp.float32) * 0.05
    bias = jax.random.normal(kb, (C_out,), dtype=jnp.float32) * 0.05

    out = patch_unembed(x, weight, bias, patch_size, out_chans)
    out = jax.block_until_ready(out)

    # Reference check in plain JAX via the NHWC path (independent layout math).
    ref_mat = jnp.transpose(x, (0, 2, 3, 1)).reshape(-1, embed_dim) @ weight.T + bias
    ref = ref_mat.reshape(B, H, W, out_chans, patch_size, patch_size)
    ref = jnp.transpose(ref, (0, 3, 1, 4, 2, 5)).reshape(
        B, out_chans, H * patch_size, W * patch_size)

    assert out.shape == (B, out_chans, H * patch_size, W * patch_size)
    # bf16 MXU operands with f32 accumulation: relaxed tolerance.
    assert jnp.allclose(out, ref, atol=2e-2, rtol=2e-2)

    print("KERNEL_OK")
</pallas_src>

<mosaic_0001>
module attributes {stable_mosaic.version = 11 : i64} {
  func.func @_conv1x1_kernel(%arg0: i32, %arg1: i32, %arg2: memref<12x32xf32, #tpu.memory_space<vmem>>, %arg3: memref<12x1xf32, #tpu.memory_space<vmem>>, %arg4: memref<1x32x128xf32, #tpu.memory_space<vmem>>, %arg5: memref<1x12x128xf32, #tpu.memory_space<vmem>>) attributes {dimension_semantics = [#tpu.dimension_semantics<parallel>, #tpu.dimension_semantics<parallel>], iteration_bounds = array<i64: 2, 2>, scalar_prefetch = 0 : i64, scratch_operands = 0 : i64, tpu.core_type = #tpu.core_type<tc>, window_params = [{pipeline_mode = #tpu.pipeline_mode<synchronous>, transform_indices = @transform_0, window_bounds = array<i64: 12, 32>}, {pipeline_mode = #tpu.pipeline_mode<synchronous>, transform_indices = @transform_1, window_bounds = array<i64: 12, 1>}, {transform_indices = @transform_2, window_bounds = array<i64: 1, 32, 128>}, {transform_indices = @transform_3, window_bounds = array<i64: 1, 12, 128>}]} {
    %c0 = arith.constant 0 : index
    %c0_0 = arith.constant 0 : index
    %c0_1 = arith.constant 0 : index
    %0 = vector.load %arg4[%c0, %c0_0, %c0_1] : memref<1x32x128xf32, #tpu.memory_space<vmem>>, vector<1x32x128xf32>
    %1 = vector.shape_cast %0 : vector<1x32x128xf32> to vector<32x128xf32>
    %c0_2 = arith.constant 0 : index
    %c0_3 = arith.constant 0 : index
    %2 = vector.load %arg2[%c0_2, %c0_3] : memref<12x32xf32, #tpu.memory_space<vmem>>, vector<12x32xf32>
    %3 = arith.truncf %1 : vector<32x128xf32> to vector<32x128xbf16>
    %4 = arith.truncf %2 : vector<12x32xf32> to vector<12x32xbf16>
    %cst = arith.constant dense<0.000000e+00> : vector<12x128xf32>
    %5 = tpu.matmul %4, %3, %cst {dimension_numbers = #tpu.dot_dimension_numbers<[1], [0], [0], [1], [0, 0, 1, 1], [], []>} : vector<12x32xbf16>, vector<32x128xbf16>, vector<12x128xf32> -> vector<12x128xf32>
    %c0_4 = arith.constant 0 : index
    %c0_5 = arith.constant 0 : index
    %6 = vector.load %arg3[%c0_4, %c0_5] : memref<12x1xf32, #tpu.memory_space<vmem>>, vector<12x1xf32>
    %7 = vector.broadcast %6 : vector<12x1xf32> to vector<12x128xf32>
    %8 = arith.addf %5, %7 : vector<12x128xf32>
    %c0_6 = arith.constant 0 : index
    %c0_7 = arith.constant 0 : index
    %c0_8 = arith.constant 0 : index
    %9 = vector.load %arg5[%c0_6, %c0_7, %c0_8] : memref<1x12x128xf32, #tpu.memory_space<vmem>>, vector<1x12x128xf32>
    %10 = vector.shape_cast %9 : vector<1x12x128xf32> to vector<12x128xf32>
    %11 = vector.shape_cast %8 : vector<12x128xf32> to vector<1x12x128xf32>
    tpu.vector_store %arg5[%c0_6, %c0_7, %c0_8], %11 {strides = array<i32>} : memref<1x12x128xf32, #tpu.memory_space<vmem>>, vector<1x12x128xf32>,
    return
  }
  func.func @transform_0(%arg0: i32, %arg1: i32) -> (i32, i32) {
    %c0_i32 = arith.constant 0 : i32
    %c0_i32_0 = arith.constant 0 : i32
    %c0_i32_1 = arith.constant 0 : i32
    return %c0_i32, %c0_i32_0 : i32, i32
  }
  func.func @transform_1(%arg0: i32, %arg1: i32) -> (i32, i32) {
    %c0_i32 = arith.constant 0 : i32
    %c0_i32_0 = arith.constant 0 : i32
    %c0_i32_1 = arith.constant 0 : i32
    return %c0_i32, %c0_i32_0 : i32, i32
  }
  func.func @transform_2(%arg0: i32, %arg1: i32) -> (i32, i32, i32) {
    %c0_i32 = arith.constant 0 : i32
    %c0_i32_0 = arith.constant 0 : i32
    return %arg0, %c0_i32, %arg1 : i32, i32, i32
  }
  func.func @transform_3(%arg0: i32, %arg1: i32) -> (i32, i32, i32) {
    %c0_i32 = arith.constant 0 : i32
    %c0_i32_0 = arith.constant 0 : i32
    return %arg0, %c0_i32, %arg1 : i32, i32, i32
  }
}

</mosaic_0001>

<llo_original>
// kernel: tpu_custom_call.1
$region0: #{tpu_custom_call.1}
  #allocation0 [shape = 'u32[]', space=smem, size = 0x4, offset = 0x4, fixed_abs, tag = 'smem constant byte address 0x4 - core index']
  #allocation1 [shape = 'u32[144,128]{1,0:T(1,128)}', space=vmem, size = 0x12000, scoped, tag = 'internal scratch']
  %s0 = inlined_call_operand.vmem [shape: f32[12,32], index: 0, kind: input, shape index: {}]
  %s1 = inlined_call_operand.vmem [shape: f32[12,1], index: 1, kind: input, shape index: {}]
  %s2 = inlined_call_operand.hbm [shape: f32[2,32,256], index: 2, kind: input, shape index: {}]
  %s3 = inlined_call_operand.vmem [shape: f32[2,12,256], index: 3, kind: output, shape index: {}]
  %s4 = sld [smem:[#allocation0]]
  $region83: #{tpu_custom_call.1} parent=0
    _
  %s6 = ssub.s32 1, %s4
  %s7 = scalar_select 0, %s6, %s4
  $region1: #{tpu_custom_call.1} parent=0
    #allocation2 [shape = 'u8[32768]{0}', space=vmem, size = 0x8000, scoped, tag = 'input window, operand 2']
    #allocation3 [shape = 's32[2]{0}', space=sflag, size = 0x8, scoped, tag = 'scoped memory for tpu_custom_call.1']
    #allocation4 [shape = 'u8[16384]{0}', space=vmem, size = 0x4000, scoped, tag = 'output window, operand 0']
    %8 = vsyncpa [#allocation3], 0
    %s9 = scalar_lea.sflag [#allocation3], 1
    %10 = vsyncpa %s9, 0
    loop: start=0, step=1, limit=6
    $region2: #{tpu_custom_call.1} parent=1 // loop_pre_header
      _
    $region3: #{tpu_custom_call.1} parent=1 // loop_header
      %s12 = sphi 0, %s16
      %p13 = scmp.ge.s32.totalorder %s12, 6
      %s19 = sphi 0, %s31
      %s20 = sphi 0, %s27
      %s21 = sphi 0, %s19
      %s22 = sphi 0, %s20
      %s23 = sphi 0, %s21
      %s24 = sphi 0, %s22
      %s32 = sphi 0, %s32
      %s34 = sphi 0, %s32
      %s35 = sphi 0, %s34
      %s49 = sphi 0, %s35
      %s53 = sphi 0, %s53
      %s55 = sphi 0, %s53
      %s56 = sphi 0, %s55
      %s70 = sphi 0, %s56
      %s78 = sphi 0, %s80
      %s81 = sphi 0, %s78
      %s82 = sphi 0, %s81
      %s98 = sphi 0, %s82
      %s106 = sphi 0, %s108
      %s109 = sphi 0, %s106
      %s110 = sphi 0, %s109
      %s126 = sphi 0, %s110
    $region4: #{tpu_custom_call.1} parent=1 // loop_header_branch
      %15 = sbr.rel (%p13) target = $region8
    $region5: #{tpu_custom_call.1} parent=1 // loop_body
      %s17 = ssub.s32 %s12, 1
      %s18 = ssub.s32 %s12, 2
      %s25 = sadd.s32 1, %s20
      %p26 = scmp.ge.s32.totalorder %s25, 2
      %s27 = scalar_select %p26, 0, %s25
      %s28 = sadd.s32 1, %s19
      %s29 = scalar_select %p26, %s28, %s19
      %p30 = scmp.ge.s32.totalorder %s29, 2
      %s31 = scalar_select %p30, 0, %s29
      %s33 = sadd.s32 %s32, 1
      %p36 = scmp.eq.s32.totalorder %s12, 3
      %p37 = scmp.ne.s32.totalorder %s32, %s34
      %p38 = scmp.eq.s32.totalorder %s12, 0
      %p39 = por %p37, %p38
      %p40 = scmp.ne.s32.totalorder %s32, %s34
      %p41 = scmp.eq.s32.totalorder %s17, 3
      %p42 = por %p40, %p41
      %p43 = scmp.ne.s32.totalorder %s34, %s35
      %p44 = scmp.eq.s32.totalorder %s17, 0
      %p45 = por %p43, %p44
      %p46 = scmp.ne.s32.totalorder %s34, %s35
      %p47 = scmp.eq.s32.totalorder %s18, 3
      %p48 = por %p46, %p47
      %p50 = scmp.ne.s32.totalorder %s35, %s49
      %p51 = scmp.eq.s32.totalorder %s18, 0
      %p52 = por %p50, %p51
      %s54 = sadd.s32 %s53, 1
      %p57 = scmp.eq.s32.totalorder %s12, 3
      %p58 = scmp.ne.s32.totalorder %s53, %s55
      %p59 = scmp.eq.s32.totalorder %s12, 0
      %p60 = por %p58, %p59
      %p61 = scmp.ne.s32.totalorder %s53, %s55
      %p62 = scmp.eq.s32.totalorder %s17, 3
      %p63 = por %p61, %p62
      %p64 = scmp.ne.s32.totalorder %s55, %s56
      %p65 = scmp.eq.s32.totalorder %s17, 0
      %p66 = por %p64, %p65
      %p67 = scmp.ne.s32.totalorder %s55, %s56
      %p68 = scmp.eq.s32.totalorder %s18, 3
      %p69 = por %p67, %p68
      %p71 = scmp.ne.s32.totalorder %s56, %s70
      %p72 = scmp.eq.s32.totalorder %s18, 0
      %p73 = por %p71, %p72
      %s74 = ssub.s32 %s19, %s31
      %s75 = ssub.s32 %s20, %s27
      %s76 = sor.u32 %s74, %s75
      %p77 = scmp.eq.s32.totalorder %s76, 0
      %s79 = sadd.s32 %s78, 1
      %s80 = scalar_select %p77, %s78, %s79
      %p83 = pneg %p77
      %p84 = scmp.eq.s32.totalorder %s12, 3
      %p85 = por %p83, %p84
      %p86 = scmp.ne.s32.totalorder %s78, %s81
      %p87 = scmp.eq.s32.totalorder %s12, 0
      %p88 = por %p86, %p87
      %p89 = scmp.ne.s32.totalorder %s78, %s81
      %p90 = scmp.eq.s32.totalorder %s17, 3
      %p91 = por %p89, %p90
      %p92 = scmp.ne.s32.totalorder %s81, %s82
      %p93 = scmp.eq.s32.totalorder %s17, 0
      %p94 = por %p92, %p93
      %p95 = scmp.ne.s32.totalorder %s81, %s82
      %p96 = scmp.eq.s32.totalorder %s18, 3
      %p97 = por %p95, %p96
      %p99 = scmp.ne.s32.totalorder %s82, %s98
      %p100 = scmp.eq.s32.totalorder %s18, 0
      %p101 = por %p99, %p100
      %s102 = ssub.s32 %s19, %s31
      %s103 = ssub.s32 %s20, %s27
      %s104 = sor.u32 %s102, %s103
      %p105 = scmp.eq.s32.totalorder %s104, 0
      %s107 = sadd.s32 %s106, 1
      %s108 = scalar_select %p105, %s106, %s107
      %p111 = pneg %p105
      %p112 = scmp.eq.s32.totalorder %s12, 3
      %p113 = por %p111, %p112
      %p114 = scmp.ne.s32.totalorder %s106, %s109
      %p115 = scmp.eq.s32.totalorder %s12, 0
      %p116 = por %p114, %p115
      %p117 = scmp.ne.s32.totalorder %s106, %s109
      %p118 = scmp.eq.s32.totalorder %s17, 3
      %p119 = por %p117, %p118
      %p120 = scmp.ne.s32.totalorder %s109, %s110
      %p121 = scmp.eq.s32.totalorder %s17, 0
      %p122 = por %p120, %p121
      %p123 = scmp.ne.s32.totalorder %s109, %s110
      %p124 = scmp.eq.s32.totalorder %s18, 3
      %p125 = por %p123, %p124
      %p127 = scmp.ne.s32.totalorder %s110, %s126
      %p128 = scmp.eq.s32.totalorder %s18, 0
      %p129 = por %p127, %p128
      %p130 = scmp.le.s32.totalorder 1, %s12
      %p131 = scmp.lt.s32.totalorder %s12, 5
      %p132 = pnand %p130, %p131
      %p133 = pneg %p132
      // Predicated region
      $region9: #{tpu_custom_call.1} parent=5 // pred_check
        _
      $region10: #{tpu_custom_call.1} parent=5 // pred_check_branch
        %135 = sbr.rel (%p132) target = $region12
      $region11: #{tpu_custom_call.1} parent=5 // pred_region
        %s136 = ssub.s32 %s12, 1
        // Predicated region
        $region13: #{tpu_custom_call.1} parent=11 // pred_check
          %p137 = pneg %p45
        $region14: #{tpu_custom_call.1} parent=11 // pred_check_branch
          %139 = sbr.rel (%p137) target = $region16
        $region15: #{tpu_custom_call.1} parent=11 // pred_region
          _
        $region16: #{tpu_custom_call.1} parent=11 // pred_fallthru
          _
        // Predicated region
        $region17: #{tpu_custom_call.1} parent=11 // pred_check
          %p140 = pneg %p66
        $region18: #{tpu_custom_call.1} parent=11 // pred_check_branch
          %142 = sbr.rel (%p140) target = $region20
        $region19: #{tpu_custom_call.1} parent=11 // pred_region
          _
        $region20: #{tpu_custom_call.1} parent=11 // pred_fallthru
          _
      $region12: #{tpu_custom_call.1} parent=5 // pred_fallthru
        _
      %p143 = scmp.lt.s32.totalorder %s12, 4
      // Predicated region
      $region21: #{tpu_custom_call.1} parent=5 // pred_check
        %p144 = pneg %p143
      $region22: #{tpu_custom_call.1} parent=5 // pred_check_branch
        %146 = sbr.rel (%p144) target = $region24
      $region23: #{tpu_custom_call.1} parent=5 // pred_region
        // Predicated region
        $region25: #{tpu_custom_call.1} parent=23 // pred_check
          %p147 = pneg %p88
        $region26: #{tpu_custom_call.1} parent=23 // pred_check_branch
          %149 = sbr.rel (%p147) target = $region28
        $region27: #{tpu_custom_call.1} parent=23 // pred_region
          %s150 = sand.u32 %s78, 1
          %s151 = scalar_lea.sflag [#allocation3], %s150
          %s152 = sand.u32 %s78, 1
          %s153 = smul.addr %s152, 32
          %s154 = scalar_lea.vmem [#allocation2], %s153
          %s156 = ssub.s32 512, 512
          %157 = vsyncadd %s151, %s156
          %s158 = smul.addr %s19, 8
          %s159 = sadd.s32 %s20, %s158
          %s160 = smul.addr %s159, 128
          %s161 = scalar_lea.hbm %s2, %s160
          %s162 = sshll.u32 %s154, 4
          %s163 = int_to_ptr.vmem [resolvable:$true] %s162
          %168 = dma.hbm_to_vmem [thread:$0]  %s161, 512, %s163, %s151, 256, 128, 8
        $region28: #{tpu_custom_call.1} parent=23 // pred_fallthru
          _
      $region24: #{tpu_custom_call.1} parent=5 // pred_fallthru
        _
      %p169 = scmp.le.s32.totalorder 1, %s12
      %p170 = scmp.lt.s32.totalorder %s12, 5
      %p171 = pnand %p169, %p170
      %p172 = pneg %p171
      // Predicated region
      $region29: #{tpu_custom_call.1} parent=5 // pred_check
        _
      $region30: #{tpu_custom_call.1} parent=5 // pred_check_branch
        %174 = sbr.rel (%p171) target = $region32
      $region31: #{tpu_custom_call.1} parent=5 // pred_region
        %s175 = ssub.s32 %s12, 1
        %s176 = sand.u32 %s81, 1
        %s177 = scalar_lea.sflag [#allocation3], %s176
        %s178 = sand.u32 %s81, 1
        %s179 = smul.addr %s178, 32
        %s180 = scalar_lea.vmem [#allocation2], %s179
        // Predicated region
        $region33: #{tpu_custom_call.1} parent=31 // pred_check
          %p181 = pneg %p94
        $region34: #{tpu_custom_call.1} parent=31 // pred_check_branch
          %183 = sbr.rel (%p181) target = $region36
        $region35: #{tpu_custom_call.1} parent=31 // pred_region
          %184 = dma.done %s177, 512
        $region36: #{tpu_custom_call.1} parent=31 // pred_fallthru
          _
        %p185 = pneg %p45
        %p186 = pneg %p42
        %p187 = pneg %p66
        %p188 = pneg %p63
        %s189 = sand.u32 %s81, 1
        %s190 = scalar_lea.sflag [#allocation3], %s189
        %s191 = sand.u32 %s81, 1
        %s192 = smul.addr %s191, 32
        %s193 = scalar_lea.vmem [#allocation2], %s192
        %p194 = pneg %p94
        %p195 = pneg %p91
        %p196 = pneg %p122
        %p197 = pneg %p119
        %s198 = sand.u32 %s109, 1
        %s199 = sand.u32 %s109, 1
        %s200 = smul.addr %s199, 16
        %s201 = scalar_lea.vmem [#allocation4], %s200
        %v203 = vld [vmem:[%s180] sm:$0xff]
        %v204 = vld [vmem:[%s180 + $0x8] sm:$0xff]
        %v205 = vld [vmem:[%s180 + $0x10] sm:$0xff]
        %v206 = vld [vmem:[%s180 + $0x18] sm:$0xff]
        %v207 = vld [vmem:[%s0] sm:$0xff]
        %v208 = vld [vmem:[%s0 + $0x8] sm:$0xf]
        %v209 = vpack.c.bf16 %v204, %v203
        %v210 = vpack.c.bf16 %v206, %v205
        %v211 = vpack.c.bf16 %v208, %v207
        %v212 = vld [vmem:[%s1] sm:$0xff]
        %v213 = vld [vmem:[%s1 + $0x8] sm:$0xf]
        %215 = vset.pattern.permute.xlu0 0
        %216 = vperm.xlu0 %215, %v212
        %v217 = vpop.permute.xlu0 %216
        %220 = vset.pattern.permute.xlu0 0
        %221 = vperm.xlu0 %220, %v213
        %v222 = vpop.permute.xlu0 %221
        %vm224 = vcmask 261120
        %v226 = vsel %vm224, %v211, 0
        %228 = vmatprep.subr.bf16.mxu0 0
        %229 = vmatpush1.bf16.msra.mxu0 0
        %230 = vmatprep.subr.bf16.mxu0 0
        %231 = vmatpush1.bf16.msra.mxu0 0
        %232 = vmatprep.subr.bf16.mxu0 0
        %233 = vmatpush1.bf16.msra.mxu0 0
        %234 = vmatprep.subr.bf16.mxu0 0
        %235 = vmatpush1.bf16.msra.mxu0 0
        %236 = vmatprep.subr.bf16.mxu0 0
        %237 = vmatpush1.bf16.msra.mxu0 0
        %238 = vmatprep.subr.bf16.mxu0 0
        %239 = vmatpush1.bf16.msra.mxu0 0
        %240 = vmatprep.subr.bf16.mxu0 0
        %241 = vmatpush1.bf16.msra.mxu0 %v210
        %242 = vmatprep.subr.bf16.mxu0 0
        %243 = vmatpush1.bf16.msra.mxu0 %v209
        %244 = vmatprep.subr.bf16.mxu0 0
        %245 = vmatpush2.bf16.msra.mxu0 0
        %246 = vmatprep.subr.bf16.mxu0 0
        %247 = vmatpush2.bf16.msra.mxu0 0
        %248 = vmatprep.subr.bf16.mxu0 0
        %249 = vmatpush2.bf16.msra.mxu0 0
        %250 = vmatprep.subr.bf16.mxu0 0
        %251 = vmatpush2.bf16.msra.mxu0 0
        %252 = vmatprep.subr.bf16.mxu0 0
        %253 = vmatpush2.bf16.msra.mxu0 0
        %254 = vmatprep.subr.bf16.mxu0 0
        %255 = vmatpush2.bf16.msra.mxu0 0
        %256 = vmatprep.subr.bf16.mxu0 0
        %257 = vmatpush2.bf16.msra.mxu0 0
        %258 = vmatprep.subr.bf16.mxu0 0
        %259 = vmatpush2.bf16.msra.mxu0 0
        %260 = vmatprep.mubr.bf16.mxu0 0
        %261 = vmatmul.mubr.bf16.gmra.mxu0 %v226
        %v262 = vpop.f32.mrf.mxu0
        %v263 = vadd.f32 %v217, %v262
        %v264 = vpop.f32.mrf.mxu0
        %v265 = vpop.f32.mrf.mxu0
        %v266 = vadd.f32 %v222, %v265
        %v267 = vpop.f32.mrf.mxu0
        %268 = vdwg.mxu0
        %269 = vst [vmem:[%s201] sm:$0xff] %v263
        %270 = vst [vmem:[%s201 + $0x8] sm:$0xf] %v266
        %s271 = sand.u32 %s109, 1
        %s272 = sand.u32 %s109, 1
        %s273 = smul.addr %s272, 16
        %s274 = scalar_lea.vmem [#allocation4], %s273
        // Predicated region
        $region37: #{tpu_custom_call.1} parent=31 // pred_check
          %p275 = pneg %p119
        $region38: #{tpu_custom_call.1} parent=31 // pred_check_branch
          %277 = sbr.rel (%p275) target = $region40
        $region39: #{tpu_custom_call.1} parent=31 // pred_region
          %s278 = smul.addr %s21, 4
          %s279 = sadd.s32 %s22, %s278
          %s280 = smul.addr %s279, 8
          %s281 = scalar_lea.vmem %s3, %s280
          // Predicated region
          $region41: #{tpu_custom_call.1} parent=39 // pred_check
            _
          $region42: #{tpu_custom_call.1} parent=39 // pred_check_branch
            %283 = sbr.rel (0) target = $region44
          $region43: #{tpu_custom_call.1} parent=39 // pred_region
            // Predicated region
            $region45: #{tpu_custom_call.1} parent=43 // pred_check
              _
            $region46: #{tpu_custom_call.1} parent=43 // pred_check_branch
              %285 = sbr.rel (0) target = $region48
            $region47: #{tpu_custom_call.1} parent=43 // pred_region
              // Predicated region
              $region60: #{tpu_custom_call.1} parent=47 // pred_check
                _
              $region61: #{tpu_custom_call.1} parent=47 // pred_check_branch
                %303 = sbr.rel (0) target = $region63
              $region62: #{tpu_custom_call.1} parent=47 // pred_region
                loop: start=0, step=1, limit=1
                $region64: #{tpu_custom_call.1} parent=62 // loop_pre_header
                  _
                $region65: #{tpu_custom_call.1} parent=62 // loop_header
                  %s305 = sphi 0, %s309
                  %p306 = scmp.ge.s32.totalorder %s305, 1
                  %s310 = sphi %s274, %s274
                  %s311 = sphi %s281, %s281
                $region66: #{tpu_custom_call.1} parent=62 // loop_header_branch
                  %308 = sbr.rel (%p306) target = $region70
                $region67: #{tpu_custom_call.1} parent=62 // loop_body
                  %v312 = vld [vmem:[%s310] sm:$0xff]
                  %313 = vst [vmem:[%s311] sm:$0xff] %v312
                  %v314 = vld [vmem:[%s310 + $0x8] sm:$0xff]
                  %315 = vst [vmem:[%s311 + $0x10] sm:$0xff] %v314
                $region68: #{tpu_custom_call.1} parent=62 // loop_footer
                  %s309 = sadd.s32 1, %s305
                $region69: #{tpu_custom_call.1} parent=62 // loop_footer_branch
                  %304 = sbr.rel target = $region65
                $region70: #{tpu_custom_call.1} parent=62 // loop_exit
                  _
              $region63: #{tpu_custom_call.1} parent=47 // pred_fallthru
                _
              // Predicated region
              $region71: #{tpu_custom_call.1} parent=47 // pred_check
                _
              $region72: #{tpu_custom_call.1} parent=47 // pred_check_branch
                %317 = sbr.rel target = $region74
              $region73: #{tpu_custom_call.1} parent=47 // pred_region
                _
              $region74: #{tpu_custom_call.1} parent=47 // pred_fallthru
                _
            $region48: #{tpu_custom_call.1} parent=43 // pred_fallthru
              _
            // Predicated region
            $region49: #{tpu_custom_call.1} parent=43 // pred_check
              _
            $region50: #{tpu_custom_call.1} parent=43 // pred_check_branch
              %287 = sbr.rel target = $region52
            $region51: #{tpu_custom_call.1} parent=43 // pred_region
              %s289 = ssub.s32 256, 1
              loop: start=0, step=1, limit=1
              $region53: #{tpu_custom_call.1} parent=51 // loop_pre_header
                _
              $region54: #{tpu_custom_call.1} parent=51 // loop_header
                %s291 = sphi 0, %s295
                %p292 = scmp.ge.s32.totalorder %s291, 1
                %s296 = sphi %s274, %s274
                %s297 = sphi %s281, %s281
              $region55: #{tpu_custom_call.1} parent=51 // loop_header_branch
                %294 = sbr.rel (%p292) target = $region59
              $region56: #{tpu_custom_call.1} parent=51 // loop_body
                %v298 = vld [vmem:[%s296] sm:%s289]
                %299 = vst [vmem:[%s297] sm:%s289] %v298
                %v300 = vld [vmem:[%s296 + $0x8] sm:%s289]
                %301 = vst [vmem:[%s297 + $0x10] sm:%s289] %v300
              $region57: #{tpu_custom_call.1} parent=51 // loop_footer
                %s295 = sadd.s32 1, %s291
              $region58: #{tpu_custom_call.1} parent=51 // loop_footer_branch
                %290 = sbr.rel target = $region54
              $region59: #{tpu_custom_call.1} parent=51 // loop_exit
                _
            $region52: #{tpu_custom_call.1} parent=43 // pred_fallthru
              _
          $region44: #{tpu_custom_call.1} parent=39 // pred_fallthru
            _
          %318 = vnop
        $region40: #{tpu_custom_call.1} parent=31 // pred_fallthru
          _
      $region32: #{tpu_custom_call.1} parent=5 // pred_fallthru
        _
      %p319 = scmp.le.s32.totalorder 2, %s12
      // Predicated region
      $region75: #{tpu_custom_call.1} parent=5 // pred_check
        %p320 = pneg %p319
      $region76: #{tpu_custom_call.1} parent=5 // pred_check_branch
        %322 = sbr.rel (%p320) target = $region78
      $region77: #{tpu_custom_call.1} parent=5 // pred_region
        %s323 = ssub.s32 %s12, 2
        // Predicated region
        $region79: #{tpu_custom_call.1} parent=77 // pred_check
          %p324 = pneg %p125
        $region80: #{tpu_custom_call.1} parent=77 // pred_check_branch
          %326 = sbr.rel (%p324) target = $region82
        $region81: #{tpu_custom_call.1} parent=77 // pred_region
          %s327 = sand.u32 %s110, 1
          %s328 = sand.u32 %s110, 1
          %s329 = smul.addr %s328, 16
          %s330 = scalar_lea.vmem [#allocation4], %s329
        $region82: #{tpu_custom_call.1} parent=77 // pred_fallthru
          _
      $region78: #{tpu_custom_call.1} parent=5 // pred_fallthru
        _
    $region6: #{tpu_custom_call.1} parent=1 // loop_footer
      %s16 = sadd.s32 1, %s12
    $region7: #{tpu_custom_call.1} parent=1 // loop_footer_branch
      %11 = sbr.rel target = $region3
    $region8: #{tpu_custom_call.1} parent=1 // loop_exit
      _
    %331 = vsyncpa [#allocation3], 1
    %s332 = scalar_lea.sflag [#allocation3], 1
    %333 = vsyncpa %s332, 1

</llo_original>
